<compile_context>
chip_gen: v6e
topology: v6e:2x2x1
jax: 0.10.0
libtpu: 0.0.40
codegen_flags: <defaults>
</compile_context>

<pallas_src>
import math
import functools

import jax
import jax.numpy as jnp
from jax.experimental import pallas as pl
from jax.experimental.pallas import tpu as pltpu

LANE = 128      # f32 lane width
SUBLANE = 8     # f32 sublane width


def _round_up(x, m):
    return ((x + m - 1) // m) * m


# --------------------------------------------------------------------------
# Pallas kernel (one batch tile per grid step):
#   add_noise + MLP (fc1 / hidden / fc3 with ReLU) + masked partial SSE
# --------------------------------------------------------------------------
def diffusion_train_kernel(x0_ref, noise_ref, sc_ref, tproj_ref, w_ref, b_ref,
                           *out_refs, n_hidden_layers, batch_valid, tile_b,
                           emit_xt_pred):
    if emit_xt_pred:
        xt_ref, pred_ref, psum_ref = out_refs
    else:
        (psum_ref,) = out_refs

    i = pl.program_id(0)

    # ---- DDPM add_noise (per-row broadcast scalars, packed as (TB, 2)) ----
    sa = sc_ref[:, 0:1]                      # sqrt(alpha_cumprod[t])
    sb = sc_ref[:, 1:2]                      # sqrt(1 - alpha_cumprod[t])
    x_t = sa * x0_ref[...] + sb * noise_ref[...]          # (TB, F), lane-dense
    if emit_xt_pred:
        xt_ref[...] = x_t

    # ---- fc1: the t_emb @ W1_t + b1 part is pre-folded into tproj_ref ----
    h = jnp.dot(x_t, w_ref[0], preferred_element_type=jnp.float32) + tproj_ref[...]
    h = jnp.maximum(h, 0.0)

    # ---- hidden layers (static unroll; depth is small) ----
    for l in range(n_hidden_layers):
        h = jnp.dot(h, w_ref[1 + l], preferred_element_type=jnp.float32) + b_ref[l]
        h = jnp.maximum(h, 0.0)

    # ---- fc3 ----
    pred = (jnp.dot(h, w_ref[1 + n_hidden_layers],
                    preferred_element_type=jnp.float32)
            + b_ref[n_hidden_layers])
    if emit_xt_pred:
        pred_ref[...] = pred

    # ---- per-block partial sum-of-squares, masked only on padded batch rows
    # (padded feature columns of pred and noise are exactly zero by
    #  construction of W_pack / B_pack / noise_p, so no column mask needed) ----
    d = pred - noise_ref[...]
    rows = jax.lax.broadcasted_iota(jnp.int32, d.shape, 0) + i * tile_b
    d = jnp.where(rows < batch_valid, d, 0.0)
    sq = d * d
    # Lane- and sublane-dense partial: fold the TB rows down to one (8, 128)
    # block with pure VPU vreg adds (no cross-lane XLU reduce, unmasked vst).
    psum_ref[0] = jnp.sum(
        sq.reshape(tile_b // SUBLANE, SUBLANE, sq.shape[-1]), axis=0)


# --------------------------------------------------------------------------
# Parameter / schedule construction (plain JAX glue, done once)
# --------------------------------------------------------------------------
def sinusoidal_embedding_table(time_steps, embed_dim):
    position = jnp.arange(time_steps, dtype=jnp.float32)[:, None]
    div = jnp.exp(jnp.arange(0, embed_dim, 2, dtype=jnp.float32)
                  * -(math.log(10000.0) / embed_dim))
    emb = jnp.zeros((time_steps, embed_dim), jnp.float32)
    emb = emb.at[:, 0::2].set(jnp.sin(position * div))
    emb = emb.at[:, 1::2].set(jnp.cos(position * div))
    return emb


def ddpm_alphas_cumprod(beta_start, beta_end, num_train_timesteps):
    betas = jnp.linspace(beta_start, beta_end, num_train_timesteps, dtype=jnp.float32)
    alphas = 1.0 - betas
    return jnp.cumprod(alphas)


def init_params(key, n_pc_points, hidden_dim, n_hidden_layers,
                num_train_timesteps, beta_start, beta_end):
    D = 3 * n_pc_points
    t_dim = 4
    d_in = D + t_dim
    H = hidden_dim
    L = n_hidden_layers

    def linear(k, fan_in, fan_out):
        k1, k2 = jax.random.split(k)
        bound = 1.0 / math.sqrt(fan_in)
        w = jax.random.uniform(k1, (fan_in, fan_out), jnp.float32, -bound, bound)
        b = jax.random.uniform(k2, (1, fan_out), jnp.float32, -bound, bound)
        return w, b

    k1, k2, k3 = jax.random.split(key, 3)
    w1, b1 = linear(k1, d_in, H)
    hkeys = jax.random.split(k2, L)
    wh_l, bh_l = [], []
    for l in range(L):
        w, b = linear(hkeys[l], H, H)
        wh_l.append(w)
        bh_l.append(b)
    w3, b3 = linear(k3, H, D)

    emb_table = sinusoidal_embedding_table(num_train_timesteps, t_dim)
    acp = ddpm_alphas_cumprod(beta_start, beta_end, num_train_timesteps)

    # ---- kernel-side packed / padded tensors (lane-dense, one DMA each) ----
    F = max(_round_up(D, LANE), _round_up(H, LANE))       # 128 for this config

    W_pack = jnp.zeros((L + 2, F, F), jnp.float32)
    W_pack = W_pack.at[0, :D, :H].set(w1[:D])             # fc1 (x_t part)
    for l in range(L):
        W_pack = W_pack.at[1 + l, :H, :H].set(wh_l[l])    # hidden layers
    W_pack = W_pack.at[L + 1, :H, :D].set(w3)             # fc3

    B_pack = jnp.zeros((L + 1, 1, F), jnp.float32)
    for l in range(L):
        B_pack = B_pack.at[l, :, :H].set(bh_l[l])
    B_pack = B_pack.at[L, :, :D].set(b3)

    # precomputed time-embedding projection table: emb[t] @ W1_t + b1
    tproj = emb_table @ w1[D:] + b1                       # (T, H)
    tproj_table = jnp.zeros((num_train_timesteps, F), jnp.float32)
    tproj_table = tproj_table.at[:, :H].set(tproj)

    return dict(
        # raw params (kept for the pure-JAX reference)
        w1x=w1[:D], w1t=w1[D:], b1=b1,
        wh=jnp.stack(wh_l, axis=0), bh=jnp.stack(bh_l, axis=0),
        w3=w3, b3=b3, emb_table=emb_table,
        # kernel-side packed tensors
        W_pack=W_pack, B_pack=B_pack, tproj_table=tproj_table,
        alphas_cumprod=acp,
        n_hidden_layers=L, hidden_dim=H, feat_pad=F,
    )


# --------------------------------------------------------------------------
# Batch-tile heuristic: large tile (amortize ~0.35 us/step grid overhead,
# fill the MXU M dimension), but multiple of 8 sublanes, capped so per-step
# residency stays far under every generation's scoped VMEM, and split into
# >= 2 grid steps when the batch allows so v7x's two TensorCores both work.
# --------------------------------------------------------------------------
def _pick_tile_b(B, max_tile=512):
    B8 = _round_up(max(B, 1), SUBLANE)
    tile = min(max_tile, B8)
    if B8 >= 2 * SUBLANE and B8 // tile < 2:
        tile = _round_up(-(-B8 // 2), SUBLANE)   # ceil(B8 / 2), sublane-aligned
    return tile


# --------------------------------------------------------------------------
# Wrapper: PointCloudDiffusionModel.forward(batch, mode="train")
# --------------------------------------------------------------------------
def forward_train(pc, noise, timestep, params, tile_b=None,
                  return_intermediates=True):
    B, N, _ = pc.shape
    D = 3 * N
    F = params["feat_pad"]
    L = params["n_hidden_layers"]

    x0 = pc.reshape(B, D).astype(jnp.float32)
    noise2 = noise.reshape(B, D).astype(jnp.float32)

    # data-dependent gathers stay in JAX glue (tables precomputed in init)
    acp = params["alphas_cumprod"][timestep]                          # (B,)
    scales = jnp.stack([jnp.sqrt(acp), jnp.sqrt(1.0 - acp)], axis=1)  # (B, 2)
    t_proj = params["tproj_table"][timestep]                          # (B, F)

    if tile_b is None:
        tile_b = _pick_tile_b(B)
    tile_b = _round_up(tile_b, SUBLANE)
    B_pad = _round_up(_round_up(B, SUBLANE), tile_b)
    nb = B_pad // tile_b

    def pad2(a, rows, cols):
        return jnp.pad(a, ((0, rows - a.shape[0]), (0, cols - a.shape[1])))

    x0_p = pad2(x0, B_pad, F)
    noise_p = pad2(noise2, B_pad, F)
    scales_p = pad2(scales, B_pad, 2)
    tproj_p = pad2(t_proj, B_pad, F)

    out_shape = []
    out_specs = []
    if return_intermediates:
        out_shape += [jax.ShapeDtypeStruct((B_pad, F), jnp.float32),   # x_t
                      jax.ShapeDtypeStruct((B_pad, F), jnp.float32)]   # pred
        out_specs += [pl.BlockSpec((tile_b, F), lambda i: (i, 0)),
                      pl.BlockSpec((tile_b, F), lambda i: (i, 0))]
    # per-block (8, 128) lane/sublane-dense SSE partials, summed in the wrapper
    out_shape += [jax.ShapeDtypeStruct((nb, SUBLANE, F), jnp.float32)]
    out_specs += [pl.BlockSpec((1, SUBLANE, F), lambda i: (i, 0, 0))]

    outs = pl.pallas_call(
        functools.partial(diffusion_train_kernel, n_hidden_layers=L,
                          batch_valid=B, tile_b=tile_b,
                          emit_xt_pred=return_intermediates),
        grid=(nb,),
        out_shape=tuple(out_shape),
        in_specs=[
            pl.BlockSpec((tile_b, F), lambda i: (i, 0)),             # x0
            pl.BlockSpec((tile_b, F), lambda i: (i, 0)),             # noise
            pl.BlockSpec((tile_b, 2), lambda i: (i, 0)),             # [sa, sb]
            pl.BlockSpec((tile_b, F), lambda i: (i, 0)),             # t_proj
            pl.BlockSpec((L + 2, F, F), lambda i: (0, 0, 0)),        # weight stack
            pl.BlockSpec((L + 1, 1, F), lambda i: (0, 0, 0)),        # bias stack
        ],
        out_specs=tuple(out_specs),
        compiler_params=pltpu.CompilerParams(
            dimension_semantics=("parallel",)),
    )(x0_p, noise_p, scales_p, tproj_p, params["W_pack"], params["B_pack"])

    if not isinstance(outs, (tuple, list)):
        outs = (outs,)

    psums = outs[-1]
    # finalize the mean over the true (B, D) region (partials are pre-masked
    # on rows; padded columns are exactly zero)
    loss = jnp.sum(psums) / (B * D)

    if return_intermediates:
        xt_p, pred_p = outs[0], outs[1]
        return loss, pred_p[:B, :D], xt_p[:B, :D]
    return loss


# Pure-JAX reference for validation
def forward_train_ref(pc, noise, timestep, params):
    B, N, _ = pc.shape
    x0 = pc.reshape(B, -1)
    noise = noise.reshape(B, -1)
    acp = params["alphas_cumprod"][timestep]
    x_t = jnp.sqrt(acp)[:, None] * x0 + jnp.sqrt(1.0 - acp)[:, None] * noise
    t_emb = params["emb_table"][timestep]
    h = jnp.maximum(x_t @ params["w1x"] + t_emb @ params["w1t"] + params["b1"], 0.0)
    for l in range(params["n_hidden_layers"]):
        h = jnp.maximum(h @ params["wh"][l] + params["bh"][l], 0.0)
    pred = h @ params["w3"] + params["b3"]
    return jnp.mean((pred - noise) ** 2), pred, x_t


if __name__ == "__main__":
    # Model config (see constructor-argument-swap note at top of file):
    #   n_pc_points=16, model hidden_dim=2, model n_hidden_layers=32
    #   -> effective MLP: hidden width 32, 2 hidden layers, time_embed_dim=4
    n_pc_points = 16
    effective_hidden_dim = 32       # = model's n_hidden_layers argument
    effective_n_hidden_layers = 2   # = model's hidden_dim argument
    num_train_timesteps = 1000      # DDPMScheduler default
    beta_start, beta_end = 1e-4, 0.02
    B = 2

    root = jax.random.PRNGKey(0)
    k_params, k_pc, k_noise, k_t = jax.random.split(root, 4)

    params = init_params(k_params, n_pc_points, effective_hidden_dim,
                         effective_n_hidden_layers, num_train_timesteps,
                         beta_start, beta_end)

    pc = jax.random.normal(k_pc, (B, n_pc_points, 3), jnp.float32)
    noise = jax.random.normal(k_noise, (B, n_pc_points, 3), jnp.float32)
    timestep = jax.random.randint(k_t, (B,), 0, num_train_timesteps, dtype=jnp.int32)

    # full forward (loss + noise_pred + x_t)
    loss, noise_pred, x_t = forward_train(pc, noise, timestep, params)
    jax.block_until_ready((loss, noise_pred, x_t))

    loss_ref, pred_ref, xt_ref = forward_train_ref(pc, noise, timestep, params)
    assert noise_pred.shape == (B, 3 * n_pc_points)
    assert jnp.allclose(x_t, xt_ref, rtol=1e-4, atol=1e-4)
    assert jnp.allclose(noise_pred, pred_ref, rtol=1e-4, atol=1e-4)
    assert jnp.allclose(loss, loss_ref, rtol=1e-4, atol=1e-4)

    # loss-only fast path (drops the padded x_t / pred HBM outputs)
    loss_only = forward_train(pc, noise, timestep, params,
                              return_intermediates=False)
    jax.block_until_ready(loss_only)
    assert jnp.allclose(loss_only, loss_ref, rtol=1e-4, atol=1e-4)

    # exercise a multi-tile grid with padded batch rows (2 grid steps, masked SSE)
    B2 = 40
    kp2, kn2, kt2 = jax.random.split(jax.random.PRNGKey(1), 3)
    pc2 = jax.random.normal(kp2, (B2, n_pc_points, 3), jnp.float32)
    noise2 = jax.random.normal(kn2, (B2, n_pc_points, 3), jnp.float32)
    ts2 = jax.random.randint(kt2, (B2,), 0, num_train_timesteps, dtype=jnp.int32)
    loss2, pred2, xt2 = forward_train(pc2, noise2, ts2, params)
    jax.block_until_ready((loss2, pred2, xt2))
    loss2_ref, pred2_ref, xt2_ref = forward_train_ref(pc2, noise2, ts2, params)
    assert jnp.allclose(xt2, xt2_ref, rtol=1e-4, atol=1e-4)
    assert jnp.allclose(pred2, pred2_ref, rtol=1e-4, atol=1e-4)
    assert jnp.allclose(loss2, loss2_ref, rtol=1e-4, atol=1e-4)

    print("KERNEL_OK")
</pallas_src>

<mosaic_0001>
module attributes {stable_mosaic.version = 11 : i64} {
  func.func @diffusion_train_kernel(%arg0: i32, %arg1: memref<8x128xf32, #tpu.memory_space<vmem>>, %arg2: memref<8x128xf32, #tpu.memory_space<vmem>>, %arg3: memref<8x2xf32, #tpu.memory_space<vmem>>, %arg4: memref<8x128xf32, #tpu.memory_space<vmem>>, %arg5: memref<4x128x128xf32, #tpu.memory_space<vmem>>, %arg6: memref<3x1x128xf32, #tpu.memory_space<vmem>>, %arg7: memref<8x128xf32, #tpu.memory_space<vmem>>, %arg8: memref<8x128xf32, #tpu.memory_space<vmem>>, %arg9: memref<1x8x128xf32, #tpu.memory_space<vmem>>) attributes {dimension_semantics = [#tpu.dimension_semantics<parallel>], iteration_bounds = array<i64: 1>, scalar_prefetch = 0 : i64, scratch_operands = 0 : i64, tpu.core_type = #tpu.core_type<tc>, window_params = [{transform_indices = @transform_0, window_bounds = array<i64: 8, 128>}, {transform_indices = @transform_1, window_bounds = array<i64: 8, 128>}, {transform_indices = @transform_2, window_bounds = array<i64: 8, 2>}, {transform_indices = @transform_3, window_bounds = array<i64: 8, 128>}, {pipeline_mode = #tpu.pipeline_mode<synchronous>, transform_indices = @transform_4, window_bounds = array<i64: 4, 128, 128>}, {pipeline_mode = #tpu.pipeline_mode<synchronous>, transform_indices = @transform_5, window_bounds = array<i64: 3, 1, 128>}, {transform_indices = @transform_6, window_bounds = array<i64: 8, 128>}, {transform_indices = @transform_7, window_bounds = array<i64: 8, 128>}, {transform_indices = @transform_8, window_bounds = array<i64: 1, 8, 128>}]} {
    %c0 = arith.constant 0 : index
    %c0_0 = arith.constant 0 : index
    %0 = vector.load %arg3[%c0, %c0_0] : memref<8x2xf32, #tpu.memory_space<vmem>>, vector<8x1xf32>
    %c0_1 = arith.constant 0 : index
    %c1 = arith.constant 1 : index
    %1 = vector.load %arg3[%c0_1, %c1] : memref<8x2xf32, #tpu.memory_space<vmem>>, vector<8x1xf32>
    %c0_2 = arith.constant 0 : index
    %c0_3 = arith.constant 0 : index
    %2 = vector.load %arg1[%c0_2, %c0_3] : memref<8x128xf32, #tpu.memory_space<vmem>>, vector<8x128xf32>
    %3 = vector.broadcast %0 : vector<8x1xf32> to vector<8x128xf32>
    %4 = arith.mulf %3, %2 : vector<8x128xf32>
    %c0_4 = arith.constant 0 : index
    %c0_5 = arith.constant 0 : index
    %5 = vector.load %arg2[%c0_4, %c0_5] : memref<8x128xf32, #tpu.memory_space<vmem>>, vector<8x128xf32>
    %6 = vector.broadcast %1 : vector<8x1xf32> to vector<8x128xf32>
    %7 = arith.mulf %6, %5 : vector<8x128xf32>
    %8 = arith.addf %4, %7 : vector<8x128xf32>
    %c0_6 = arith.constant 0 : index
    %c0_7 = arith.constant 0 : index
    %9 = vector.load %arg7[%c0_6, %c0_7] : memref<8x128xf32, #tpu.memory_space<vmem>>, vector<8x128xf32>
    tpu.vector_store %arg7[%c0_6, %c0_7], %8 {strides = array<i32>} : memref<8x128xf32, #tpu.memory_space<vmem>>, vector<8x128xf32>,
    %c0_8 = arith.constant 0 : index
    %c0_9 = arith.constant 0 : index
    %c0_10 = arith.constant 0 : index
    %10 = vector.load %arg5[%c0_8, %c0_9, %c0_10] : memref<4x128x128xf32, #tpu.memory_space<vmem>>, vector<1x128x128xf32>
    %11 = vector.shape_cast %10 : vector<1x128x128xf32> to vector<128x128xf32>
    %cst = arith.constant dense<0.000000e+00> : vector<8x128xf32>
    %12 = tpu.matmul %8, %11, %cst {dimension_numbers = #tpu.dot_dimension_numbers<[1], [0], [0], [1], [0, 0, 1, 1], [], []>} : vector<8x128xf32>, vector<128x128xf32>, vector<8x128xf32> -> vector<8x128xf32>
    %c0_11 = arith.constant 0 : index
    %c0_12 = arith.constant 0 : index
    %13 = vector.load %arg4[%c0_11, %c0_12] : memref<8x128xf32, #tpu.memory_space<vmem>>, vector<8x128xf32>
    %14 = arith.addf %12, %13 : vector<8x128xf32>
    %cst_13 = arith.constant 0.000000e+00 : f32
    %15 = vector.broadcast %cst_13 : f32 to vector<8x128xf32>
    %16 = arith.maximumf %14, %15 : vector<8x128xf32>
    %c1_14 = arith.constant 1 : index
    %c0_15 = arith.constant 0 : index
    %c0_16 = arith.constant 0 : index
    %17 = vector.load %arg5[%c1_14, %c0_15, %c0_16] : memref<4x128x128xf32, #tpu.memory_space<vmem>>, vector<1x128x128xf32>
    %18 = vector.shape_cast %17 : vector<1x128x128xf32> to vector<128x128xf32>
    %cst_17 = arith.constant dense<0.000000e+00> : vector<8x128xf32>
    %19 = tpu.matmul %16, %18, %cst_17 {dimension_numbers = #tpu.dot_dimension_numbers<[1], [0], [0], [1], [0, 0, 1, 1], [], []>} : vector<8x128xf32>, vector<128x128xf32>, vector<8x128xf32> -> vector<8x128xf32>
    %c0_18 = arith.constant 0 : index
    %c0_19 = arith.constant 0 : index
    %c0_20 = arith.constant 0 : index
    %20 = vector.load %arg6[%c0_18, %c0_19, %c0_20] : memref<3x1x128xf32, #tpu.memory_space<vmem>>, vector<1x1x128xf32>
    %21 = vector.shape_cast %20 : vector<1x1x128xf32> to vector<1x128xf32>
    %22 = vector.broadcast %21 : vector<1x128xf32> to vector<8x128xf32>
    %23 = arith.addf %19, %22 : vector<8x128xf32>
    %cst_21 = arith.constant 0.000000e+00 : f32
    %24 = vector.broadcast %cst_21 : f32 to vector<8x128xf32>
    %25 = arith.maximumf %23, %24 : vector<8x128xf32>
    %c2 = arith.constant 2 : index
    %c0_22 = arith.constant 0 : index
    %c0_23 = arith.constant 0 : index
    %26 = vector.load %arg5[%c2, %c0_22, %c0_23] : memref<4x128x128xf32, #tpu.memory_space<vmem>>, vector<1x128x128xf32>
    %27 = vector.shape_cast %26 : vector<1x128x128xf32> to vector<128x128xf32>
    %cst_24 = arith.constant dense<0.000000e+00> : vector<8x128xf32>
    %28 = tpu.matmul %25, %27, %cst_24 {dimension_numbers = #tpu.dot_dimension_numbers<[1], [0], [0], [1], [0, 0, 1, 1], [], []>} : vector<8x128xf32>, vector<128x128xf32>, vector<8x128xf32> -> vector<8x128xf32>
    %c1_25 = arith.constant 1 : index
    %c0_26 = arith.constant 0 : index
    %c0_27 = arith.constant 0 : index
    %29 = vector.load %arg6[%c1_25, %c0_26, %c0_27] : memref<3x1x128xf32, #tpu.memory_space<vmem>>, vector<1x1x128xf32>
    %30 = vector.shape_cast %29 : vector<1x1x128xf32> to vector<1x128xf32>
    %31 = vector.broadcast %30 : vector<1x128xf32> to vector<8x128xf32>
    %32 = arith.addf %28, %31 : vector<8x128xf32>
    %cst_28 = arith.constant 0.000000e+00 : f32
    %33 = vector.broadcast %cst_28 : f32 to vector<8x128xf32>
    %34 = arith.maximumf %32, %33 : vector<8x128xf32>
    %c3 = arith.constant 3 : index
    %c0_29 = arith.constant 0 : index
    %c0_30 = arith.constant 0 : index
    %35 = vector.load %arg5[%c3, %c0_29, %c0_30] : memref<4x128x128xf32, #tpu.memory_space<vmem>>, vector<1x128x128xf32>
    %36 = vector.shape_cast %35 : vector<1x128x128xf32> to vector<128x128xf32>
    %cst_31 = arith.constant dense<0.000000e+00> : vector<8x128xf32>
    %37 = tpu.matmul %34, %36, %cst_31 {dimension_numbers = #tpu.dot_dimension_numbers<[1], [0], [0], [1], [0, 0, 1, 1], [], []>} : vector<8x128xf32>, vector<128x128xf32>, vector<8x128xf32> -> vector<8x128xf32>
    %c2_32 = arith.constant 2 : index
    %c0_33 = arith.constant 0 : index
    %c0_34 = arith.constant 0 : index
    %38 = vector.load %arg6[%c2_32, %c0_33, %c0_34] : memref<3x1x128xf32, #tpu.memory_space<vmem>>, vector<1x1x128xf32>
    %39 = vector.shape_cast %38 : vector<1x1x128xf32> to vector<1x128xf32>
    %40 = vector.broadcast %39 : vector<1x128xf32> to vector<8x128xf32>
    %41 = arith.addf %37, %40 : vector<8x128xf32>
    %c0_35 = arith.constant 0 : index
    %c0_36 = arith.constant 0 : index
    %42 = vector.load %arg8[%c0_35, %c0_36] : memref<8x128xf32, #tpu.memory_space<vmem>>, vector<8x128xf32>
    tpu.vector_store %arg8[%c0_35, %c0_36], %41 {strides = array<i32>} : memref<8x128xf32, #tpu.memory_space<vmem>>, vector<8x128xf32>,
    %c0_37 = arith.constant 0 : index
    %c0_38 = arith.constant 0 : index
    %43 = vector.load %arg2[%c0_37, %c0_38] : memref<8x128xf32, #tpu.memory_space<vmem>>, vector<8x128xf32>
    %44 = arith.subf %41, %43 : vector<8x128xf32>
    %45 = tpu.iota {dimensions = array<i32: 0>} : vector<8x128xi32>
    %c8_i32 = arith.constant 8 : i32
    %46 = arith.muli %arg0, %c8_i32 : i32
    %47 = vector.broadcast %46 : i32 to vector<8x128xi32>
    %48 = arith.addi %45, %47 : vector<8x128xi32>
    %c2_i32 = arith.constant 2 : i32
    %49 = vector.broadcast %c2_i32 : i32 to vector<8x128xi32>
    %50 = arith.cmpi slt, %48, %49 : vector<8x128xi32>
    %cst_39 = arith.constant 0.000000e+00 : f32
    %51 = vector.broadcast %cst_39 : f32 to vector<8x128xf32>
    %52 = arith.select %50, %44, %51 : vector<8x128xi1>, vector<8x128xf32>
    %53 = arith.mulf %52, %52 : vector<8x128xf32>
    %54 = vector.shape_cast %53 : vector<8x128xf32> to vector<1x8x128xf32>
    %cst_40 = arith.constant dense<0.000000e+00> : vector<8x128xf32>
    %55 = vector.multi_reduction <add>, %54, %cst_40 [0] : vector<1x8x128xf32> to vector<8x128xf32>
    %c0_41 = arith.constant 0 : index
    %c0_42 = arith.constant 0 : index
    %c0_43 = arith.constant 0 : index
    %56 = vector.load %arg9[%c0_41, %c0_42, %c0_43] : memref<1x8x128xf32, #tpu.memory_space<vmem>>, vector<1x8x128xf32>
    %57 = vector.shape_cast %56 : vector<1x8x128xf32> to vector<8x128xf32>
    %58 = vector.shape_cast %55 : vector<8x128xf32> to vector<1x8x128xf32>
    tpu.vector_store %arg9[%c0_41, %c0_42, %c0_43], %58 {strides = array<i32>} : memref<1x8x128xf32, #tpu.memory_space<vmem>>, vector<1x8x128xf32>,
    return
  }
  func.func @transform_0(%arg0: i32) -> (i32, i32) {
    %c0_i32 = arith.constant 0 : i32
    %c0_i32_0 = arith.constant 0 : i32
    return %arg0, %c0_i32 : i32, i32
  }
  func.func @transform_1(%arg0: i32) -> (i32, i32) {
    %c0_i32 = arith.constant 0 : i32
    %c0_i32_0 = arith.constant 0 : i32
    return %arg0, %c0_i32 : i32, i32
  }
  func.func @transform_2(%arg0: i32) -> (i32, i32) {
    %c0_i32 = arith.constant 0 : i32
    %c0_i32_0 = arith.constant 0 : i32
    return %arg0, %c0_i32 : i32, i32
  }
  func.func @transform_3(%arg0: i32) -> (i32, i32) {
    %c0_i32 = arith.constant 0 : i32
    %c0_i32_0 = arith.constant 0 : i32
    return %arg0, %c0_i32 : i32, i32
  }
  func.func @transform_4(%arg0: i32) -> (i32, i32, i32) {
    %c0_i32 = arith.constant 0 : i32
    %c0_i32_0 = arith.constant 0 : i32
    %c0_i32_1 = arith.constant 0 : i32
    %c0_i32_2 = arith.constant 0 : i32
    return %c0_i32, %c0_i32_0, %c0_i32_1 : i32, i32, i32
  }
  func.func @transform_5(%arg0: i32) -> (i32, i32, i32) {
    %c0_i32 = arith.constant 0 : i32
    %c0_i32_0 = arith.constant 0 : i32
    %c0_i32_1 = arith.constant 0 : i32
    %c0_i32_2 = arith.constant 0 : i32
    return %c0_i32, %c0_i32_0, %c0_i32_1 : i32, i32, i32
  }
  func.func @transform_6(%arg0: i32) -> (i32, i32) {
    %c0_i32 = arith.constant 0 : i32
    %c0_i32_0 = arith.constant 0 : i32
    return %arg0, %c0_i32 : i32, i32
  }
  func.func @transform_7(%arg0: i32) -> (i32, i32) {
    %c0_i32 = arith.constant 0 : i32
    %c0_i32_0 = arith.constant 0 : i32
    return %arg0, %c0_i32 : i32, i32
  }
  func.func @transform_8(%arg0: i32) -> (i32, i32, i32) {
    %c0_i32 = arith.constant 0 : i32
    %c0_i32_0 = arith.constant 0 : i32
    %c0_i32_1 = arith.constant 0 : i32
    return %arg0, %c0_i32, %c0_i32_0 : i32, i32, i32
  }
}

</mosaic_0001>

<llo_original>
// kernel: tpu_custom_call.1
$region0: #{tpu_custom_call.1}
  #allocation0 [shape = 'u32[]', space=smem, size = 0x4, offset = 0x4, fixed_abs, tag = 'smem constant byte address 0x4 - core index']
  #allocation1 [shape = 'u32[144,128]{1,0:T(1,128)}', space=vmem, size = 0x12000, scoped, tag = 'internal scratch']
  %s0 = inlined_call_operand.vmem [shape: f32[8,128], index: 0, kind: input, shape index: {}]
  %s1 = inlined_call_operand.hbm [shape: f32[8,128], index: 1, kind: input, shape index: {}]
  %s2 = inlined_call_operand.vmem [shape: f32[8,2], index: 2, kind: input, shape index: {}]
  %s3 = inlined_call_operand.hbm [shape: f32[8,128], index: 3, kind: input, shape index: {}]
  %s4 = inlined_call_operand.hbm [shape: f32[4,128,128], index: 4, kind: input, shape index: {}]
  %s5 = inlined_call_operand.vmem [shape: f32[3,1,128], index: 5, kind: input, shape index: {}]
  %s6 = inlined_call_operand.hbm [shape: f32[8,128], index: 6, kind: output, shape index: {0}]
  %s7 = inlined_call_operand.hbm [shape: f32[8,128], index: 7, kind: output, shape index: {1}]
  %s8 = inlined_call_operand.hbm [shape: f32[1,8,128], index: 8, kind: output, shape index: {2}]
  %9 = xla_tuple %s6, %s7, %s8
  %s10 = sld [smem:[#allocation0]]
  $region62: #{tpu_custom_call.1} parent=0
    _
  %s12 = ssub.s32 1, %s10
  %s13 = scalar_select 0, %s12, %s10
  $region1: #{tpu_custom_call.1} parent=0
    #allocation2 [shape = 'u8[4096]{0}', space=vmem, size = 0x1000, scoped, tag = 'input window, operand 1, single buffered']
    #allocation3 [shape = 's32[1]{0}', space=sflag, size = 0x4, scoped, tag = 'scoped memory for tpu_custom_call.1']
    #allocation4 [shape = 's32[1]{0}', space=sflag, size = 0x4, scoped, tag = 'scoped memory for tpu_custom_call.1']
    #allocation5 [shape = 'u8[4096]{0}', space=vmem, size = 0x1000, scoped, tag = 'input window, operand 3, single buffered']
    #allocation6 [shape = 's32[1]{0}', space=sflag, size = 0x4, scoped, tag = 'scoped memory for tpu_custom_call.1']
    #allocation7 [shape = 'u8[262144]{0}', space=vmem, size = 0x40000, scoped, tag = 'input window, operand 4, single buffered']
    #allocation8 [shape = 'u8[4096]{0}', space=vmem, size = 0x1000, scoped, tag = 'output window, operand 0, single buffered']
    #allocation9 [shape = 'u8[4096]{0}', space=vmem, size = 0x1000, scoped, tag = 'output window, operand 1, single buffered']
    #allocation10 [shape = 's32[1]{0}', space=sflag, size = 0x4, scoped, tag = 'scoped memory for tpu_custom_call.1']
    #allocation11 [shape = 'u8[4096]{0}', space=vmem, size = 0x1000, scoped, tag = 'output window, operand 2, single buffered']
    %14 = vsyncpa [#allocation3], 0
    %15 = vsyncpa [#allocation6], 0
    %16 = vsyncpa [#allocation4], 0
    %17 = vsyncpa [#allocation10], 0
    // Predicated region
    $region2: #{tpu_custom_call.1} parent=1 // pred_check
      _
    $region3: #{tpu_custom_call.1} parent=1 // pred_check_branch
      %19 = sbr.rel (0) target = $region5
    $region4: #{tpu_custom_call.1} parent=1 // pred_region
      _
    $region5: #{tpu_custom_call.1} parent=1 // pred_fallthru
      _
    // Predicated region
    $region6: #{tpu_custom_call.1} parent=1 // pred_check
      _
    $region7: #{tpu_custom_call.1} parent=1 // pred_check_branch
      %21 = sbr.rel (0) target = $region9
    $region8: #{tpu_custom_call.1} parent=1 // pred_region
      %s23 = ssub.s32 128, 128
      %24 = vsyncadd [#allocation3], %s23
      %s26 = sshll.u32 [#allocation2], 4
      %s27 = int_to_ptr.vmem [resolvable:$true] %s26
      %29 = dma.hbm_to_vmem [thread:$0]  %s1, 128, %s27, [#allocation3]
    $region9: #{tpu_custom_call.1} parent=1 // pred_fallthru
      _
    // Predicated region
    $region10: #{tpu_custom_call.1} parent=1 // pred_check
      _
    $region11: #{tpu_custom_call.1} parent=1 // pred_check_branch
      %31 = sbr.rel (0) target = $region13
    $region12: #{tpu_custom_call.1} parent=1 // pred_region
      _
    $region13: #{tpu_custom_call.1} parent=1 // pred_fallthru
      _
    // Predicated region
    $region14: #{tpu_custom_call.1} parent=1 // pred_check
      _
    $region15: #{tpu_custom_call.1} parent=1 // pred_check_branch
      %33 = sbr.rel (0) target = $region17
    $region16: #{tpu_custom_call.1} parent=1 // pred_region
      %s35 = ssub.s32 128, 128
      %36 = vsyncadd [#allocation6], %s35
      %s38 = sshll.u32 [#allocation5], 4
      %s39 = int_to_ptr.vmem [resolvable:$true] %s38
      %41 = dma.hbm_to_vmem [thread:$0]  %s3, 128, %s39, [#allocation6]
    $region17: #{tpu_custom_call.1} parent=1 // pred_fallthru
      _
    // Predicated region
    $region18: #{tpu_custom_call.1} parent=1 // pred_check
      _
    $region19: #{tpu_custom_call.1} parent=1 // pred_check_branch
      %43 = sbr.rel (0) target = $region21
    $region20: #{tpu_custom_call.1} parent=1 // pred_region
      %s45 = ssub.s32 8192, 8192
      %46 = vsyncadd [#allocation6], %s45
      %s47 = sshll.u32 [#allocation7], 4
      %s48 = int_to_ptr.vmem [resolvable:$true] %s47
      %53 = dma.hbm_to_vmem [thread:$0]  %s4, 8192, %s48, [#allocation6], 128, 128, 8
    $region21: #{tpu_custom_call.1} parent=1 // pred_fallthru
      _
    // Predicated region
    $region22: #{tpu_custom_call.1} parent=1 // pred_check
      _
    $region23: #{tpu_custom_call.1} parent=1 // pred_check_branch
      %55 = sbr.rel (0) target = $region25
    $region24: #{tpu_custom_call.1} parent=1 // pred_region
      _
    $region25: #{tpu_custom_call.1} parent=1 // pred_fallthru
      _
    // Predicated region
    $region26: #{tpu_custom_call.1} parent=1 // pred_check
      _
    $region27: #{tpu_custom_call.1} parent=1 // pred_check_branch
      %57 = sbr.rel (0) target = $region29
    $region28: #{tpu_custom_call.1} parent=1 // pred_region
      %58 = dma.done [#allocation3], 128
    $region29: #{tpu_custom_call.1} parent=1 // pred_fallthru
      _
    // Predicated region
    $region30: #{tpu_custom_call.1} parent=1 // pred_check
      _
    $region31: #{tpu_custom_call.1} parent=1 // pred_check_branch
      %60 = sbr.rel (0) target = $region33
    $region32: #{tpu_custom_call.1} parent=1 // pred_region
      %61 = dma.done [#allocation6], 128
    $region33: #{tpu_custom_call.1} parent=1 // pred_fallthru
      _
    // Predicated region
    $region34: #{tpu_custom_call.1} parent=1 // pred_check
      _
    $region35: #{tpu_custom_call.1} parent=1 // pred_check_branch
      %63 = sbr.rel (0) target = $region37
    $region36: #{tpu_custom_call.1} parent=1 // pred_region
      %64 = dma.done [#allocation6], 8192
    $region37: #{tpu_custom_call.1} parent=1 // pred_fallthru
      _
    %v65 = vld [vmem:[%s2] sm:$0xff]
    %v66 = vld [vmem:[%s0] sm:$0xff]
    %68 = vset.pattern.permute.xlu0 0
    %69 = vperm.xlu0 %68, %v65
    %v70 = vpop.permute.xlu0 %69
    %v72 = vmul.f32 %v70, %v66
    %v73 = vld [vmem:[#allocation2] sm:$0xff]
    %74 = vset.pattern.permute.xlu0 1
    %75 = vperm.xlu0 %74, %v65
    %v76 = vpop.permute.xlu0 %75
    %v78 = vmul.f32 %v76, %v73
    %v79 = vadd.f32 %v72, %v78
    %80 = vst [vmem:[#allocation8] sm:$0xff] %v79
    %v81 = vld [vmem:[#allocation7] sm:$0xff]
    %v82 = vld [vmem:[#allocation7 + $0x8] sm:$0xff]
    %v83 = vld [vmem:[#allocation7 + $0x10] sm:$0xff]
    %v84 = vld [vmem:[#allocation7 + $0x18] sm:$0xff]
    %v85 = vld [vmem:[#allocation7 + $0x20] sm:$0xff]
    %v86 = vld [vmem:[#allocation7 + $0x28] sm:$0xff]
    %v87 = vld [vmem:[#allocation7 + $0x30] sm:$0xff]
    %v88 = vld [vmem:[#allocation7 + $0x38] sm:$0xff]
    %v89 = vld [vmem:[#allocation7 + $0x40] sm:$0xff]
    %v90 = vld [vmem:[#allocation7 + $0x48] sm:$0xff]
    %v91 = vld [vmem:[#allocation7 + $0x50] sm:$0xff]
    %v92 = vld [vmem:[#allocation7 + $0x58] sm:$0xff]
    %v93 = vld [vmem:[#allocation7 + $0x60] sm:$0xff]
    %v94 = vld [vmem:[#allocation7 + $0x68] sm:$0xff]
    %v95 = vld [vmem:[#allocation7 + $0x70] sm:$0xff]
    %v96 = vld [vmem:[#allocation7 + $0x78] sm:$0xff]
    %v97 = vld [vmem:[#allocation5] sm:$0xff]
    %98 = vmatprep.subr.mxu0 0.0
    %99 = vmatpush1.msra.mxu0 %v96
    %100 = vmatprep.subr.mxu0 0.0
    %101 = vmatpush1.msra.mxu0 %v95
    %102 = vmatprep.subr.mxu0 0.0
    %103 = vmatpush1.msra.mxu0 %v94
    %104 = vmatprep.subr.mxu0 0.0
    %105 = vmatpush1.msra.mxu0 %v93
    %106 = vmatprep.subr.mxu0 0.0
    %107 = vmatpush1.msra.mxu0 %v92
    %108 = vmatprep.subr.mxu0 0.0
    %109 = vmatpush1.msra.mxu0 %v91
    %110 = vmatprep.subr.mxu0 0.0
    %111 = vmatpush1.msra.mxu0 %v90
    %112 = vmatprep.subr.mxu0 0.0
    %113 = vmatpush1.msra.mxu0 %v89
    %114 = vmatprep.subr.mxu0 0.0
    %115 = vmatpush1.msra.mxu0 %v88
    %116 = vmatprep.subr.mxu0 0.0
    %117 = vmatpush1.msra.mxu0 %v87
    %118 = vmatprep.subr.mxu0 0.0
    %119 = vmatpush1.msra.mxu0 %v86
    %120 = vmatprep.subr.mxu0 0.0
    %121 = vmatpush1.msra.mxu0 %v85
    %122 = vmatprep.subr.mxu0 0.0
    %123 = vmatpush1.msra.mxu0 %v84
    %124 = vmatprep.subr.mxu0 0.0
    %125 = vmatpush1.msra.mxu0 %v83
    %126 = vmatprep.subr.mxu0 0.0
    %127 = vmatpush1.msra.mxu0 %v82
    %128 = vmatprep.subr.mxu0 0.0
    %129 = vmatpush1.msra.mxu0 %v81
    %130 = vmatprep.subr.mxu0 0.0
    %131 = vmatpush2.msra.mxu0 0.0
    %132 = vmatprep.subr.mxu0 0.0
    %133 = vmatpush2.msra.mxu0 0.0
    %134 = vmatprep.subr.mxu0 0.0
    %135 = vmatpush2.msra.mxu0 0.0
    %136 = vmatprep.subr.mxu0 0.0
    %137 = vmatpush2.msra.mxu0 0.0
    %138 = vmatprep.subr.mxu0 0.0
    %139 = vmatpush2.msra.mxu0 0.0
    %140 = vmatprep.subr.mxu0 0.0
    %141 = vmatpush2.msra.mxu0 0.0
    %142 = vmatprep.subr.mxu0 0.0
    %143 = vmatpush2.msra.mxu0 0.0
    %144 = vmatprep.subr.mxu0 0.0
    %145 = vmatpush2.msra.mxu0 0.0
    %146 = vmatprep.subr.mxu0 0.0
    %147 = vmatpush2.msra.mxu0 0.0
    %148 = vmatprep.subr.mxu0 0.0
    %149 = vmatpush2.msra.mxu0 0.0
    %150 = vmatprep.subr.mxu0 0.0
    %151 = vmatpush2.msra.mxu0 0.0
    %152 = vmatprep.subr.mxu0 0.0
    %153 = vmatpush2.msra.mxu0 0.0
    %154 = vmatprep.subr.mxu0 0.0
    %155 = vmatpush2.msra.mxu0 0.0
    %156 = vmatprep.subr.mxu0 0.0
    %157 = vmatpush2.msra.mxu0 0.0
    %158 = vmatprep.subr.mxu0 0.0
    %159 = vmatpush2.msra.mxu0 0.0
    %160 = vmatprep.subr.mxu0 0.0
    %161 = vmatpush2.msra.mxu0 0.0
    %162 = vmatprep.mubr.f32.mxu0 0.0
    %163 = vmatmul.mubr.f32.gmra.mxu0 %v79
    %v164 = vpop.f32.mrf.mxu0
    %v165 = vadd.f32 %v97, %v164
    %v166 = vpop.f32.mrf.mxu0
    %167 = vdwg.mxu0
    %v168 = vmax.f32 %v165, 0.0
    %s169 = scalar_lea.vmem [#allocation7], 128
    %v170 = vld [vmem:[%s169] sm:$0xff]
    %v171 = vld [vmem:[%s169 + $0x8] sm:$0xff]
    %v172 = vld [vmem:[%s169 + $0x10] sm:$0xff]
    %v173 = vld [vmem:[%s169 + $0x18] sm:$0xff]
    %v174 = vld [vmem:[%s169 + $0x20] sm:$0xff]
    %v175 = vld [vmem:[%s169 + $0x28] sm:$0xff]
    %v176 = vld [vmem:[%s169 + $0x30] sm:$0xff]
    %v177 = vld [vmem:[%s169 + $0x38] sm:$0xff]
    %v178 = vld [vmem:[%s169 + $0x40] sm:$0xff]
    %v179 = vld [vmem:[%s169 + $0x48] sm:$0xff]
    %v180 = vld [vmem:[%s169 + $0x50] sm:$0xff]
    %v181 = vld [vmem:[%s169 + $0x58] sm:$0xff]
    %v182 = vld [vmem:[%s169 + $0x60] sm:$0xff]
    %v183 = vld [vmem:[%s169 + $0x68] sm:$0xff]
    %v184 = vld [vmem:[%s169 + $0x70] sm:$0xff]
    %v185 = vld [vmem:[%s169 + $0x78] sm:$0xff]
    %v186 = vld [vmem:[%s5] sm:$0x1]
    %v188 = vlaneseq
    %v189 = vshrl.u32 %v188, 7
    %v190 = vsub.s32 0, %v189
    %v191 = vrot.slane %v186, %v190
    %193 = vmatprep.subr.mxu0 0.0
    %194 = vmatpush1.msra.mxu0 %v185
    %195 = vmatprep.subr.mxu0 0.0
    %196 = vmatpush1.msra.mxu0 %v184
    %197 = vmatprep.subr.mxu0 0.0
    %198 = vmatpush1.msra.mxu0 %v183
    %199 = vmatprep.subr.mxu0 0.0
    %200 = vmatpush1.msra.mxu0 %v182
    %201 = vmatprep.subr.mxu0 0.0
    %202 = vmatpush1.msra.mxu0 %v181
    %203 = vmatprep.subr.mxu0 0.0
    %204 = vmatpush1.msra.mxu0 %v180
    %205 = vmatprep.subr.mxu0 0.0
    %206 = vmatpush1.msra.mxu0 %v179
    %207 = vmatprep.subr.mxu0 0.0
    %208 = vmatpush1.msra.mxu0 %v178
    %209 = vmatprep.subr.mxu0 0.0
    %210 = vmatpush1.msra.mxu0 %v177
    %211 = vmatprep.subr.mxu0 0.0
    %212 = vmatpush1.msra.mxu0 %v176
    %213 = vmatprep.subr.mxu0 0.0
    %214 = vmatpush1.msra.mxu0 %v175
    %215 = vmatprep.subr.mxu0 0.0
    %216 = vmatpush1.msra.mxu0 %v174
    %217 = vmatprep.subr.mxu0 0.0
    %218 = vmatpush1.msra.mxu0 %v173
    %219 = vmatprep.subr.mxu0 0.0
    %220 = vmatpush1.msra.mxu0 %v172
    %221 = vmatprep.subr.mxu0 0.0
    %222 = vmatpush1.msra.mxu0 %v171
    %223 = vmatprep.subr.mxu0 0.0
    %224 = vmatpush1.msra.mxu0 %v170
    %225 = vmatprep.subr.mxu0 0.0
    %226 = vmatpush2.msra.mxu0 0.0
    %227 = vmatprep.subr.mxu0 0.0
    %228 = vmatpush2.msra.mxu0 0.0
    %229 = vmatprep.subr.mxu0 0.0
    %230 = vmatpush2.msra.mxu0 0.0
    %231 = vmatprep.subr.mxu0 0.0
    %232 = vmatpush2.msra.mxu0 0.0
    %233 = vmatprep.subr.mxu0 0.0
    %234 = vmatpush2.msra.mxu0 0.0
    %235 = vmatprep.subr.mxu0 0.0
    %236 = vmatpush2.msra.mxu0 0.0
    %237 = vmatprep.subr.mxu0 0.0
    %238 = vmatpush2.msra.mxu0 0.0
    %239 = vmatprep.subr.mxu0 0.0
    %240 = vmatpush2.msra.mxu0 0.0
    %241 = vmatprep.subr.mxu0 0.0
    %242 = vmatpush2.msra.mxu0 0.0
    %243 = vmatprep.subr.mxu0 0.0
    %244 = vmatpush2.msra.mxu0 0.0
    %245 = vmatprep.subr.mxu0 0.0
    %246 = vmatpush2.msra.mxu0 0.0
    %247 = vmatprep.subr.mxu0 0.0
    %248 = vmatpush2.msra.mxu0 0.0
    %249 = vmatprep.subr.mxu0 0.0
    %250 = vmatpush2.msra.mxu0 0.0
    %251 = vmatprep.subr.mxu0 0.0
    %252 = vmatpush2.msra.mxu0 0.0
    %253 = vmatprep.subr.mxu0 0.0
    %254 = vmatpush2.msra.mxu0 0.0
    %255 = vmatprep.subr.mxu0 0.0
    %256 = vmatpush2.msra.mxu0 0.0
    %257 = vmatprep.mubr.f32.mxu0 0.0
    %258 = vmatmul.mubr.f32.gmra.mxu0 %v168
    %v259 = vpop.f32.mrf.mxu0
    %v260 = vadd.f32 %v191, %v259
    %v261 = vpop.f32.mrf.mxu0
    %262 = vdwg.mxu0
    %v263 = vmax.f32 %v260, 0.0
    %s264 = scalar_lea.vmem [#allocation7], 256
    %v265 = vld [vmem:[%s264] sm:$0xff]
    %v266 = vld [vmem:[%s264 + $0x8] sm:$0xff]
    %v267 = vld [vmem:[%s264 + $0x10] sm:$0xff]
    %v268 = vld [vmem:[%s264 + $0x18] sm:$0xff]
    %v269 = vld [vmem:[%s264 + $0x20] sm:$0xff]
    %v270 = vld [vmem:[%s264 + $0x28] sm:$0xff]
    %v271 = vld [vmem:[%s264 + $0x30] sm:$0xff]
    %v272 = vld [vmem:[%s264 + $0x38] sm:$0xff]
    %v273 = vld [vmem:[%s264 + $0x40] sm:$0xff]
    %v274 = vld [vmem:[%s264 + $0x48] sm:$0xff]
    %v275 = vld [vmem:[%s264 + $0x50] sm:$0xff]
    %v276 = vld [vmem:[%s264 + $0x58] sm:$0xff]
    %v277 = vld [vmem:[%s264 + $0x60] sm:$0xff]
    %v278 = vld [vmem:[%s264 + $0x68] sm:$0xff]
    %v279 = vld [vmem:[%s264 + $0x70] sm:$0xff]
    %v280 = vld [vmem:[%s264 + $0x78] sm:$0xff]
    %s281 = scalar_lea.vmem %s5, 1
    %v282 = vld [vmem:[%s281] sm:$0x1]
    %v284 = vlaneseq
    %v285 = vshrl.u32 %v284, 7
    %v286 = vsub.s32 0, %v285
    %v287 = vrot.slane %v282, %v286
    %289 = vmatprep.subr.mxu0 0.0
    %290 = vmatpush1.msra.mxu0 %v280
    %291 = vmatprep.subr.mxu0 0.0
    %292 = vmatpush1.msra.mxu0 %v279
    %293 = vmatprep.subr.mxu0 0.0
    %294 = vmatpush1.msra.mxu0 %v278
    %295 = vmatprep.subr.mxu0 0.0
    %296 = vmatpush1.msra.mxu0 %v277
    %297 = vmatprep.subr.mxu0 0.0
    %298 = vmatpush1.msra.mxu0 %v276
    %299 = vmatprep.subr.mxu0 0.0
    %300 = vmatpush1.msra.mxu0 %v275
    %301 = vmatprep.subr.mxu0 0.0
    %302 = vmatpush1.msra.mxu0 %v274
    %303 = vmatprep.subr.mxu0 0.0
    %304 = vmatpush1.msra.mxu0 %v273
    %305 = vmatprep.subr.mxu0 0.0
    %306 = vmatpush1.msra.mxu0 %v272
    %307 = vmatprep.subr.mxu0 0.0
    %308 = vmatpush1.msra.mxu0 %v271
    %309 = vmatprep.subr.mxu0 0.0
    %310 = vmatpush1.msra.mxu0 %v270
    %311 = vmatprep.subr.mxu0 0.0
    %312 = vmatpush1.msra.mxu0 %v269
    %313 = vmatprep.subr.mxu0 0.0
    %314 = vmatpush1.msra.mxu0 %v268
    %315 = vmatprep.subr.mxu0 0.0
    %316 = vmatpush1.msra.mxu0 %v267
    %317 = vmatprep.subr.mxu0 0.0
    %318 = vmatpush1.msra.mxu0 %v266
    %319 = vmatprep.subr.mxu0 0.0
    %320 = vmatpush1.msra.mxu0 %v265
    %321 = vmatprep.subr.mxu0 0.0
    %322 = vmatpush2.msra.mxu0 0.0
    %323 = vmatprep.subr.mxu0 0.0
    %324 = vmatpush2.msra.mxu0 0.0
    %325 = vmatprep.subr.mxu0 0.0
    %326 = vmatpush2.msra.mxu0 0.0
    %327 = vmatprep.subr.mxu0 0.0
    %328 = vmatpush2.msra.mxu0 0.0
    %329 = vmatprep.subr.mxu0 0.0
    %330 = vmatpush2.msra.mxu0 0.0
    %331 = vmatprep.subr.mxu0 0.0
    %332 = vmatpush2.msra.mxu0 0.0
    %333 = vmatprep.subr.mxu0 0.0
    %334 = vmatpush2.msra.mxu0 0.0
    %335 = vmatprep.subr.mxu0 0.0
    %336 = vmatpush2.msra.mxu0 0.0
    %337 = vmatprep.subr.mxu0 0.0
    %338 = vmatpush2.msra.mxu0 0.0
    %339 = vmatprep.subr.mxu0 0.0
    %340 = vmatpush2.msra.mxu0 0.0
    %341 = vmatprep.subr.mxu0 0.0
    %342 = vmatpush2.msra.mxu0 0.0
    %343 = vmatprep.subr.mxu0 0.0
    %344 = vmatpush2.msra.mxu0 0.0
    %345 = vmatprep.subr.mxu0 0.0
    %346 = vmatpush2.msra.mxu0 0.0
    %347 = vmatprep.subr.mxu0 0.0
    %348 = vmatpush2.msra.mxu0 0.0
    %349 = vmatprep.subr.mxu0 0.0
    %350 = vmatpush2.msra.mxu0 0.0
    %351 = vmatprep.subr.mxu0 0.0
    %352 = vmatpush2.msra.mxu0 0.0
    %353 = vmatprep.mubr.f32.mxu0 0.0
    %354 = vmatmul.mubr.f32.gmra.mxu0 %v263
    %v355 = vpop.f32.mrf.mxu0
    %v356 = vadd.f32 %v287, %v355
    %v357 = vpop.f32.mrf.mxu0
    %358 = vdwg.mxu0
    %v359 = vmax.f32 %v356, 0.0
    %s360 = scalar_lea.vmem [#allocation7], 384
    %v361 = vld [vmem:[%s360] sm:$0xff]
    %v362 = vld [vmem:[%s360 + $0x8] sm:$0xff]
    %v363 = vld [vmem:[%s360 + $0x10] sm:$0xff]
    %v364 = vld [vmem:[%s360 + $0x18] sm:$0xff]
    %v365 = vld [vmem:[%s360 + $0x20] sm:$0xff]
    %v366 = vld [vmem:[%s360 + $0x28] sm:$0xff]
    %v367 = vld [vmem:[%s360 + $0x30] sm:$0xff]
    %v368 = vld [vmem:[%s360 + $0x38] sm:$0xff]
    %v369 = vld [vmem:[%s360 + $0x40] sm:$0xff]
    %v370 = vld [vmem:[%s360 + $0x48] sm:$0xff]
    %v371 = vld [vmem:[%s360 + $0x50] sm:$0xff]
    %v372 = vld [vmem:[%s360 + $0x58] sm:$0xff]
    %v373 = vld [vmem:[%s360 + $0x60] sm:$0xff]
    %v374 = vld [vmem:[%s360 + $0x68] sm:$0xff]
    %v375 = vld [vmem:[%s360 + $0x70] sm:$0xff]
    %v376 = vld [vmem:[%s360 + $0x78] sm:$0xff]
    %s377 = scalar_lea.vmem %s5, 2
    %v378 = vld [vmem:[%s377] sm:$0x1]
    %v380 = vlaneseq
    %v381 = vshrl.u32 %v380, 7
    %v382 = vsub.s32 0, %v381
    %v383 = vrot.slane %v378, %v382
    %385 = vmatprep.subr.mxu0 0.0
    %386 = vmatpush1.msra.mxu0 %v376
    %387 = vmatprep.subr.mxu0 0.0
    %388 = vmatpush1.msra.mxu0 %v375
    %389 = vmatprep.subr.mxu0 0.0
    %390 = vmatpush1.msra.mxu0 %v374
    %391 = vmatprep.subr.mxu0 0.0
    %392 = vmatpush1.msra.mxu0 %v373
    %393 = vmatprep.subr.mxu0 0.0
    %394 = vmatpush1.msra.mxu0 %v372
    %395 = vmatprep.subr.mxu0 0.0
    %396 = vmatpush1.msra.mxu0 %v371
    %397 = vmatprep.subr.mxu0 0.0
    %398 = vmatpush1.msra.mxu0 %v370
    %399 = vmatprep.subr.mxu0 0.0
    %400 = vmatpush1.msra.mxu0 %v369
    %401 = vmatprep.subr.mxu0 0.0
    %402 = vmatpush1.msra.mxu0 %v368
    %403 = vmatprep.subr.mxu0 0.0
    %404 = vmatpush1.msra.mxu0 %v367
    %405 = vmatprep.subr.mxu0 0.0
    %406 = vmatpush1.msra.mxu0 %v366
    %407 = vmatprep.subr.mxu0 0.0
    %408 = vmatpush1.msra.mxu0 %v365
    %409 = vmatprep.subr.mxu0 0.0
    %410 = vmatpush1.msra.mxu0 %v364
    %411 = vmatprep.subr.mxu0 0.0
    %412 = vmatpush1.msra.mxu0 %v363
    %413 = vmatprep.subr.mxu0 0.0
    %414 = vmatpush1.msra.mxu0 %v362
    %415 = vmatprep.subr.mxu0 0.0
    %416 = vmatpush1.msra.mxu0 %v361
    %417 = vmatprep.subr.mxu0 0.0
    %418 = vmatpush2.msra.mxu0 0.0
    %419 = vmatprep.subr.mxu0 0.0
    %420 = vmatpush2.msra.mxu0 0.0
    %421 = vmatprep.subr.mxu0 0.0
    %422 = vmatpush2.msra.mxu0 0.0
    %423 = vmatprep.subr.mxu0 0.0
    %424 = vmatpush2.msra.mxu0 0.0
    %425 = vmatprep.subr.mxu0 0.0
    %426 = vmatpush2.msra.mxu0 0.0
    %427 = vmatprep.subr.mxu0 0.0
    %428 = vmatpush2.msra.mxu0 0.0
    %429 = vmatprep.subr.mxu0 0.0
    %430 = vmatpush2.msra.mxu0 0.0
    %431 = vmatprep.subr.mxu0 0.0
    %432 = vmatpush2.msra.mxu0 0.0
    %433 = vmatprep.subr.mxu0 0.0
    %434 = vmatpush2.msra.mxu0 0.0
    %435 = vmatprep.subr.mxu0 0.0
    %436 = vmatpush2.msra.mxu0 0.0
    %437 = vmatprep.subr.mxu0 0.0
    %438 = vmatpush2.msra.mxu0 0.0
    %439 = vmatprep.subr.mxu0 0.0
    %440 = vmatpush2.msra.mxu0 0.0
    %441 = vmatprep.subr.mxu0 0.0
    %442 = vmatpush2.msra.mxu0 0.0
    %443 = vmatprep.subr.mxu0 0.0
    %444 = vmatpush2.msra.mxu0 0.0
    %445 = vmatprep.subr.mxu0 0.0
    %446 = vmatpush2.msra.mxu0 0.0
    %447 = vmatprep.subr.mxu0 0.0
    %448 = vmatpush2.msra.mxu0 0.0
    %449 = vmatprep.mubr.f32.mxu0 0.0
    %450 = vmatmul.mubr.f32.gmra.mxu0 %v359
    %v451 = vpop.f32.mrf.mxu0
    %v452 = vadd.f32 %v383, %v451
    %v453 = vpop.f32.mrf.mxu0
    %454 = vdwg.mxu0
    %455 = vst [vmem:[#allocation9] sm:$0xff] %v452
    %v456 = vld [vmem:[#allocation2] sm:$0xff]
    %v457 = vsub.f32 %v452, %v456
    %v458 = vlaneseq
    %v459 = vshrl.u32 %v458, 7
    %s460 = smul.u32 0, 8
    %v461 = vstv %s460
    %v462 = vadd.s32 %v459, %v461
    %vm463 = vcmp.lt.s32.totalorder %v462, 2
    %v464 = vsel %vm463, %v457, 0.0
    %v465 = vmul.f32 %v464, %v464
    %v466 = vadd.f32 %v465, 0.0
    %467 = vst [vmem:[#allocation11] sm:$0xff] %v466
    // Predicated region
    $region38: #{tpu_custom_call.1} parent=1 // pred_check
      _
    $region39: #{tpu_custom_call.1} parent=1 // pred_check_branch
      %469 = sbr.rel (0) target = $region41
    $region40: #{tpu_custom_call.1} parent=1 // pred_region
      %s471 = ssub.s32 128, 128
      %472 = vsyncadd [#allocation4], %s471
      %s474 = sshll.u32 [#allocation8], 4
      %s475 = int_to_ptr.vmem [resolvable:$true] %s474
      %477 = dma.vmem_to_hbm [thread:$0]  %s475, 128, %s6, [#allocation4]
    $region41: #{tpu_custom_call.1} parent=1 // pred_fallthru
      _
    // Predicated region
    $region42: #{tpu_custom_call.1} parent=1 // pred_check
      _
    $region43: #{tpu_custom_call.1} parent=1 // pred_check_branch
      %479 = sbr.rel (0) target = $region45
    $region44: #{tpu_custom_call.1} parent=1 // pred_region
      %s481 = ssub.s32 128, 128
      %482 = vsyncadd [#allocation10], %s481
      %s484 = sshll.u32 [#allocation9], 4
      %s485 = int_to_ptr.vmem [resolvable:$true] %s484
      %487 = dma.vmem_to_hbm [thread:$0]  %s485, 128, %s7, [#allocation10]
    $region45: #{tpu_custom_call.1} parent=1 // pred_fallthru
      _
    // Predicated region
    $region46: #{tpu_custom_call.1} parent=1 // pred_check
      _
    $region47: #{tpu_custom_call.1} parent=1 // pred_check_branch
      %489 = sbr.rel (0) target = $region49
    $region48: #{tpu_custom_call.1} parent=1 // pred_region
      %s491 = ssub.s32 128, 128
      %492 = vsyncadd [#allocation10], %s491
      %s494 = sshll.u32 [#allocation11], 4
      %s495 = int_to_ptr.vmem [resolvable:$true] %s494
      %497 = dma.vmem_to_hbm [thread:$0]  %s495, 128, %s8, [#allocation10]
    $region49: #{tpu_custom_call.1} parent=1 // pred_fallthru
      _
    // Predicated region
    $region50: #{tpu_custom_call.1} parent=1 // pred_check
      _
    $region51: #{tpu_custom_call.1} parent=1 // pred_check_branch
      %499 = sbr.rel (0) target = $region53
    $region52: #{tpu_custom_call.1} parent=1 // pred_region
      %500 = dma.done [#allocation4], 128
    $region53: #{tpu_custom_call.1} parent=1 // pred_fallthru
      _
    // Predicated region
    $region54: #{tpu_custom_call.1} parent=1 // pred_check
      _
    $region55: #{tpu_custom_call.1} parent=1 // pred_check_branch
      %502 = sbr.rel (0) target = $region57
    $region56: #{tpu_custom_call.1} parent=1 // pred_region
      %503 = dma.done [#allocation10], 128
    $region57: #{tpu_custom_call.1} parent=1 // pred_fallthru
      _
    // Predicated region
    $region58: #{tpu_custom_call.1} parent=1 // pred_check
      _
    $region59: #{tpu_custom_call.1} parent=1 // pred_check_branch
      %505 = sbr.rel (0) target = $region61
    $region60: #{tpu_custom_call.1} parent=1 // pred_region
      %506 = dma.done [#allocation10], 128
    $region61: #{tpu_custom_call.1} parent=1 // pred_fallthru
      _
    %507 = vsyncpa [#allocation3], 1
    %508 = vsyncpa [#allocation6], 1
    %509 = vsyncpa [#allocation4], 1
    %510 = vsyncpa [#allocation10], 1

</llo_original>
